<compile_context>
chip_gen: v7x
topology: tpu7x:2x2x1
jax: 0.10.0
libtpu: 0.0.40
codegen_flags: <defaults>
</compile_context>

<pallas_src>
import jax
import jax.numpy as jnp
from jax.experimental import pallas as pl
from jax.experimental.pallas import tpu as pltpu

_LN_EPS = 1e-5  # PyTorch nn.LayerNorm default


def _make_sgu_kernel(split):
    """split=True  -> refs: (u_ref, v_ref, gamma, beta, w, pbias, o_ref)
       split=False -> refs: (x_ref,        gamma, beta, w, pbias, o_ref)"""

    def kernel(*refs):
        if split:
            u_ref, v_ref, gamma_ref, beta_ref, w_ref, pb_ref, o_ref = refs
        else:
            x_ref, gamma_ref, beta_ref, w_ref, pb_ref, o_ref = refs
        tb, S, C = o_ref.shape
        f32 = jnp.float32

        # Grid-invariant parameters: load + broadcast ONCE per grid step
        # (hoisted out of the batch loop).
        gamma = jnp.broadcast_to(gamma_ref[...].astype(f32), (S, C))
        beta = jnp.broadcast_to(beta_ref[...].astype(f32), (S, C))
        pbias = jnp.broadcast_to(pb_ref[...].astype(f32), (S, C))
        w = w_ref[...]  # fed to the MXU in its native dtype

        def body(b, carry):
            if split:
                u = u_ref[b]                      # (S, C), lane-aligned DMA split
                v = v_ref[b].astype(f32)          # (S, C)
            else:
                xb = x_ref[b]                     # (S, 2*C)
                u = xb[:, :C]
                v = xb[:, C:].astype(f32)

            # LayerNorm over the channel axis (f32 math; rsqrt -> EUP slot).
            mean = jnp.mean(v, axis=-1, keepdims=True)
            vc = v - mean
            var = jnp.mean(vc * vc, axis=-1, keepdims=True)
            v_ln = vc * jax.lax.rsqrt(var + _LN_EPS) * gamma + beta

            # permute -> Linear(S, S) -> permute  ==  W @ v_ln  (+ bias on rows).
            v_proj = jnp.dot(w, v_ln.astype(w.dtype),
                             preferred_element_type=f32) + pbias

            o_ref[b] = (u.astype(f32) * v_proj).astype(o_ref.dtype)
            return carry

        jax.lax.fori_loop(0, tb, body, 0)

    return kernel


def _vmem_capacity_bytes():
    try:
        return int(pltpu.get_tpu_info().vmem_capacity_bytes)
    except Exception:
        return 64 * 1024 * 1024  # conservative: v7x per-TensorCore physical VMEM


def _pick_batch_tile(B, per_b_bytes, fixed_bytes, vmem_budget):
    # Target ~6 MiB of HBM traffic (x tile + out tile) per grid step so the
    # ~0.35 us per-step overhead is well amortized on every generation.
    target = 6 * 1024 * 1024
    tb = max(1, min(B, target // max(1, per_b_bytes)))
    # Keep double-buffered in/out tiles + resident params inside the VMEM budget.
    max_tb = (vmem_budget - fixed_bytes) // max(1, 2 * per_b_bytes)
    tb = max(1, min(tb, max_tb))
    # Keep >= 2 grid steps when possible (parallel axis shards across v7x TCs).
    if B >= 2:
        tb = min(tb, pl.cdiv(B, 2))
    return int(max(1, tb))


def spatial_gating_unit(x, ln_gamma, ln_beta, proj_w, proj_b, *, tb=None):
    """x: [B, S, d_ffn]; ln_*: [d_ffn//2]; proj_w: [S, S] (PyTorch [out, in]);
    proj_b: [S]  ->  output [B, S, d_ffn//2]."""
    B, S, F = x.shape
    assert F % 2 == 0, "d_ffn must be even (chunk(2, dim=-1))"
    C = F // 2
    itemsize = x.dtype.itemsize

    per_b_bytes = S * (F + C) * itemsize          # x + out bytes per batch row
    w_bytes = S * S * proj_w.dtype.itemsize
    fixed_bytes = w_bytes + (2 * C + 2 * S) * 4 + (1 << 20)
    vmem_cap = _vmem_capacity_bytes()
    vmem_budget = int(vmem_cap * 0.70)

    if tb is None:
        tb = _pick_batch_tile(B, per_b_bytes, fixed_bytes, vmem_budget)
    grid_b = pl.cdiv(B, tb)
    # Nudge the step count even (v7x: the two TensorCores split this axis).
    if grid_b % 2 == 1 and grid_b < B:
        tb_alt = pl.cdiv(B, grid_b + 1)
        if pl.cdiv(B, tb_alt) % 2 == 0:
            tb = int(tb_alt)
            grid_b = pl.cdiv(B, tb)
    # No jnp.pad: a non-divisible batch uses Pallas's ragged final block
    # (OOB stores masked; every batch row's compute is independent).

    gamma2 = ln_gamma.reshape(1, C)
    beta2 = ln_beta.reshape(1, C)
    pbias2 = proj_b.reshape(S, 1)

    # Split the u/v chunk at the DMA level only when the half-width C keeps
    # the block lane-aligned (the (8,128) block rule forbids it otherwise).
    split = (C % 128 == 0)

    param_specs = [
        pl.BlockSpec((1, C), lambda i: (0, 0)),      # LN gamma
        pl.BlockSpec((1, C), lambda i: (0, 0)),      # LN beta
        pl.BlockSpec((S, S), lambda i: (0, 0)),      # proj weight (resident)
        pl.BlockSpec((S, 1), lambda i: (0, 0)),      # proj bias
    ]
    if split:
        in_specs = [
            pl.BlockSpec((tb, S, C), lambda i: (i, 0, 0)),   # u half of x
            pl.BlockSpec((tb, S, C), lambda i: (i, 0, 1)),   # v half of x
        ] + param_specs
        args = (x, x, gamma2, beta2, proj_w, pbias2)
    else:
        in_specs = [
            pl.BlockSpec((tb, S, F), lambda i: (i, 0, 0)),   # full x tile
        ] + param_specs
        args = (x, gamma2, beta2, proj_w, pbias2)

    needed_vmem = 2 * tb * per_b_bytes + fixed_bytes + (2 << 20)
    vmem_limit = int(min(max(needed_vmem, 32 << 20), int(vmem_cap * 0.9)))

    flops = 2 * B * S * S * C + 10 * B * S * C
    bytes_accessed = (B * S * (F + C)) * itemsize + w_bytes + (2 * C + S) * 4

    out = pl.pallas_call(
        _make_sgu_kernel(split),
        out_shape=jax.ShapeDtypeStruct((B, S, C), x.dtype),
        grid_spec=pltpu.PrefetchScalarGridSpec(
            num_scalar_prefetch=0,
            grid=(grid_b,),
            in_specs=in_specs,
            out_specs=pl.BlockSpec((tb, S, C), lambda i: (i, 0, 0)),
        ),
        compiler_params=pltpu.CompilerParams(
            dimension_semantics=("parallel",),
            vmem_limit_bytes=vmem_limit),
        cost_estimate=pl.CostEstimate(
            flops=flops,
            transcendentals=B * S,
            bytes_accessed=bytes_accessed),
    )(*args)

    return out


def _reference(x, ln_gamma, ln_beta, proj_w, proj_b):
    C = x.shape[-1] // 2
    u, v = x[..., :C], x[..., C:]
    mean = v.mean(axis=-1, keepdims=True)
    var = ((v - mean) ** 2).mean(axis=-1, keepdims=True)
    v = (v - mean) / jnp.sqrt(var + _LN_EPS) * ln_gamma + ln_beta
    # permute -> Linear(seq_len, seq_len) -> permute back
    v = jnp.einsum("bsc,ts->btc", v, proj_w) + proj_b[None, :, None]
    return u * v


if __name__ == "__main__":
    # Small shapes consistent with the module: batch=2, seq_len=8, d_ffn=32.
    B, S, d_ffn = 2, 8, 32
    C = d_ffn // 2

    key = jax.random.PRNGKey(0)
    kx, kg, kb, kw, kpb = jax.random.split(key, 5)

    x = jax.random.normal(kx, (B, S, d_ffn), dtype=jnp.float32)
    ln_gamma = 1.0 + 0.1 * jax.random.normal(kg, (C,), dtype=jnp.float32)
    ln_beta = 0.05 * jax.random.normal(kb, (C,), dtype=jnp.float32)
    proj_w = 0.02 * jax.random.normal(kw, (S, S), dtype=jnp.float32)
    proj_b = 0.02 * jax.random.normal(kpb, (S,), dtype=jnp.float32)

    y = spatial_gating_unit(x, ln_gamma, ln_beta, proj_w, proj_b)
    y = jax.block_until_ready(y)

    y_ref = _reference(x, ln_gamma, ln_beta, proj_w, proj_b)
    assert y.shape == (B, S, C)
    assert jnp.allclose(y, y_ref, atol=1e-4, rtol=1e-4), "mismatch vs reference"

    print("KERNEL_OK")
</pallas_src>

<mosaic_0001>
module attributes {stable_mosaic.version = 11 : i64} {
  func.func @kernel(%arg0: i32, %arg1: memref<1x8x32xf32, #tpu.memory_space<vmem>>, %arg2: memref<1x16xf32, #tpu.memory_space<vmem>>, %arg3: memref<1x16xf32, #tpu.memory_space<vmem>>, %arg4: memref<8x8xf32, #tpu.memory_space<vmem>>, %arg5: memref<8x1xf32, #tpu.memory_space<vmem>>, %arg6: memref<1x8x16xf32, #tpu.memory_space<vmem>>) attributes {dimension_semantics = [#tpu.dimension_semantics<parallel>], iteration_bounds = array<i64: 2>, scalar_prefetch = 0 : i64, scratch_operands = 0 : i64, tpu.core_type = #tpu.core_type<tc>, window_params = [{transform_indices = @transform_0, window_bounds = array<i64: 1, 8, 32>}, {pipeline_mode = #tpu.pipeline_mode<synchronous>, transform_indices = @transform_1, window_bounds = array<i64: 1, 16>}, {pipeline_mode = #tpu.pipeline_mode<synchronous>, transform_indices = @transform_2, window_bounds = array<i64: 1, 16>}, {pipeline_mode = #tpu.pipeline_mode<synchronous>, transform_indices = @transform_3, window_bounds = array<i64: 8, 8>}, {pipeline_mode = #tpu.pipeline_mode<synchronous>, transform_indices = @transform_4, window_bounds = array<i64: 8, 1>}, {transform_indices = @transform_5, window_bounds = array<i64: 1, 8, 16>}]} {
    %c0 = arith.constant 0 : index
    %c0_0 = arith.constant 0 : index
    %0 = vector.load %arg2[%c0, %c0_0] : memref<1x16xf32, #tpu.memory_space<vmem>>, vector<1x16xf32>
    %1 = vector.shape_cast %0 : vector<1x16xf32> to vector<1x16xf32>
    %2 = vector.broadcast %1 : vector<1x16xf32> to vector<8x16xf32>
    %c0_1 = arith.constant 0 : index
    %c0_2 = arith.constant 0 : index
    %3 = vector.load %arg3[%c0_1, %c0_2] : memref<1x16xf32, #tpu.memory_space<vmem>>, vector<1x16xf32>
    %4 = vector.shape_cast %3 : vector<1x16xf32> to vector<1x16xf32>
    %5 = vector.broadcast %4 : vector<1x16xf32> to vector<8x16xf32>
    %c0_3 = arith.constant 0 : index
    %c0_4 = arith.constant 0 : index
    %6 = vector.load %arg5[%c0_3, %c0_4] : memref<8x1xf32, #tpu.memory_space<vmem>>, vector<8x1xf32>
    %7 = vector.shape_cast %6 : vector<8x1xf32> to vector<8x1xf32>
    %8 = vector.broadcast %7 : vector<8x1xf32> to vector<8x16xf32>
    %c0_5 = arith.constant 0 : index
    %c0_6 = arith.constant 0 : index
    %9 = vector.load %arg4[%c0_5, %c0_6] : memref<8x8xf32, #tpu.memory_space<vmem>>, vector<8x8xf32>
    %c0_i32 = arith.constant 0 : i32
    %10 = arith.index_cast %c0_i32 : i32 to index
    %c0_7 = arith.constant 0 : index
    %c0_8 = arith.constant 0 : index
    %11 = vector.load %arg1[%10, %c0_7, %c0_8] : memref<1x8x32xf32, #tpu.memory_space<vmem>>, vector<1x8x32xf32>
    %12 = vector.shape_cast %11 : vector<1x8x32xf32> to vector<8x32xf32>
    %13 = vector.extract_strided_slice %12 {offsets = [0, 0], sizes = [8, 16], strides = [1, 1]} : vector<8x32xf32> to vector<8x16xf32>
    %14 = vector.extract_strided_slice %12 {offsets = [0, 16], sizes = [8, 16], strides = [1, 1]} : vector<8x32xf32> to vector<8x16xf32>
    %cst = arith.constant dense<0.000000e+00> : vector<8xf32>
    %15 = vector.multi_reduction <add>, %14, %cst [1] : vector<8x16xf32> to vector<8xf32>
    %16 = vector.shape_cast %15 : vector<8xf32> to vector<8x1xf32>
    %cst_9 = arith.constant 1.600000e+01 : f32
    %17 = vector.broadcast %cst_9 : f32 to vector<8x1xf32>
    %18 = arith.divf %16, %17 : vector<8x1xf32>
    %19 = vector.broadcast %18 : vector<8x1xf32> to vector<8x16xf32>
    %20 = arith.subf %14, %19 : vector<8x16xf32>
    %21 = arith.mulf %20, %20 : vector<8x16xf32>
    %cst_10 = arith.constant dense<0.000000e+00> : vector<8xf32>
    %22 = vector.multi_reduction <add>, %21, %cst_10 [1] : vector<8x16xf32> to vector<8xf32>
    %23 = vector.shape_cast %22 : vector<8xf32> to vector<8x1xf32>
    %cst_11 = arith.constant 1.600000e+01 : f32
    %24 = vector.broadcast %cst_11 : f32 to vector<8x1xf32>
    %25 = arith.divf %23, %24 : vector<8x1xf32>
    %cst_12 = arith.constant 9.99999974E-6 : f32
    %26 = vector.broadcast %cst_12 : f32 to vector<8x1xf32>
    %27 = arith.addf %25, %26 : vector<8x1xf32>
    %28 = math.rsqrt %27 : vector<8x1xf32>
    %29 = vector.broadcast %28 : vector<8x1xf32> to vector<8x16xf32>
    %30 = arith.mulf %20, %29 : vector<8x16xf32>
    %31 = arith.mulf %30, %2 : vector<8x16xf32>
    %32 = arith.addf %31, %5 : vector<8x16xf32>
    %cst_13 = arith.constant dense<0.000000e+00> : vector<8x16xf32>
    %33 = tpu.matmul %9, %32, %cst_13 {dimension_numbers = #tpu.dot_dimension_numbers<[1], [0], [0], [1], [0, 0, 1, 1], [], []>} : vector<8x8xf32>, vector<8x16xf32>, vector<8x16xf32> -> vector<8x16xf32>
    %34 = arith.addf %33, %8 : vector<8x16xf32>
    %35 = arith.mulf %13, %34 : vector<8x16xf32>
    %36 = arith.index_cast %c0_i32 : i32 to index
    %c0_14 = arith.constant 0 : index
    %c0_15 = arith.constant 0 : index
    %37 = vector.load %arg6[%36, %c0_14, %c0_15] : memref<1x8x16xf32, #tpu.memory_space<vmem>>, vector<1x8x16xf32>
    %38 = vector.shape_cast %37 : vector<1x8x16xf32> to vector<8x16xf32>
    %39 = vector.shape_cast %35 : vector<8x16xf32> to vector<1x8x16xf32>
    tpu.vector_store %arg6[%36, %c0_14, %c0_15], %39 {strides = array<i32>} : memref<1x8x16xf32, #tpu.memory_space<vmem>>, vector<1x8x16xf32>,
    %c1_i32 = arith.constant 1 : i32
    return
  }
  func.func @transform_0(%arg0: i32) -> (i32, i32, i32) {
    %c0_i32 = arith.constant 0 : i32
    %c0_i32_0 = arith.constant 0 : i32
    %c0_i32_1 = arith.constant 0 : i32
    return %arg0, %c0_i32, %c0_i32_0 : i32, i32, i32
  }
  func.func @transform_1(%arg0: i32) -> (i32, i32) {
    %c0_i32 = arith.constant 0 : i32
    %c0_i32_0 = arith.constant 0 : i32
    %c0_i32_1 = arith.constant 0 : i32
    return %c0_i32, %c0_i32_0 : i32, i32
  }
  func.func @transform_2(%arg0: i32) -> (i32, i32) {
    %c0_i32 = arith.constant 0 : i32
    %c0_i32_0 = arith.constant 0 : i32
    %c0_i32_1 = arith.constant 0 : i32
    return %c0_i32, %c0_i32_0 : i32, i32
  }
  func.func @transform_3(%arg0: i32) -> (i32, i32) {
    %c0_i32 = arith.constant 0 : i32
    %c0_i32_0 = arith.constant 0 : i32
    %c0_i32_1 = arith.constant 0 : i32
    return %c0_i32, %c0_i32_0 : i32, i32
  }
  func.func @transform_4(%arg0: i32) -> (i32, i32) {
    %c0_i32 = arith.constant 0 : i32
    %c0_i32_0 = arith.constant 0 : i32
    %c0_i32_1 = arith.constant 0 : i32
    return %c0_i32, %c0_i32_0 : i32, i32
  }
  func.func @transform_5(%arg0: i32) -> (i32, i32, i32) {
    %c0_i32 = arith.constant 0 : i32
    %c0_i32_0 = arith.constant 0 : i32
    %c0_i32_1 = arith.constant 0 : i32
    return %arg0, %c0_i32, %c0_i32_0 : i32, i32, i32
  }
}

</mosaic_0001>

<llo_original>
// kernel: tpu_custom_call.1
$region0: #{tpu_custom_call.1}
  #allocation0 [shape = 'u32[]', space=smem, size = 0x4, offset = 0x4, fixed_abs, tag = 'smem constant byte address 0x4 - core index']
  #allocation1 [shape = 'u32[144,128]{1,0:T(1,128)}', space=vmem, size = 0x12000, scoped, tag = 'internal scratch']
  %s0 = inlined_call_operand.hbm [shape: f32[2,8,32], index: 0, kind: input, shape index: {}]
  %s1 = inlined_call_operand.vmem [shape: f32[1,16], index: 1, kind: input, shape index: {}]
  %s2 = inlined_call_operand.vmem [shape: f32[1,16], index: 2, kind: input, shape index: {}]
  %s3 = inlined_call_operand.vmem [shape: f32[8,8], index: 3, kind: input, shape index: {}]
  %s4 = inlined_call_operand.vmem [shape: f32[8,1], index: 4, kind: input, shape index: {}]
  %s5 = inlined_call_operand.hbm [shape: f32[2,8,16], index: 5, kind: output, shape index: {}]
  %s6 = sld [smem:[#allocation0]]
  $region57: #{tpu_custom_call.1} parent=0
    _
  %s8 = ssub.s32 1, %s6
  %s9 = scalar_select 0, %s8, %s6
  $region1: #{tpu_custom_call.1} parent=0
    #allocation2 [shape = 'u8[8192]{0}', space=vmem, size = 0x2000, scoped, tag = 'input window, operand 0']
    #allocation3 [shape = 's32[2]{0}', space=sflag, size = 0x8, scoped, tag = 'scoped memory for tpu_custom_call.1']
    #allocation4 [shape = 's32[2]{0}', space=sflag, size = 0x8, scoped, tag = 'scoped memory for tpu_custom_call.1']
    #allocation5 [shape = 'u8[8192]{0}', space=vmem, size = 0x2000, scoped, tag = 'output window, operand 0']
    %10 = vsyncpa [#allocation3], 0
    %s11 = scalar_lea.sflag [#allocation3], 1
    %12 = vsyncpa %s11, 0
    %13 = vsyncpa [#allocation4], 0
    %s14 = scalar_lea.sflag [#allocation4], 1
    %15 = vsyncpa %s14, 0
    loop: start=0, step=1, limit=4
    $region2: #{tpu_custom_call.1} parent=1 // loop_pre_header
      _
    $region3: #{tpu_custom_call.1} parent=1 // loop_header
      %s17 = sphi 0, %s21
      %p18 = scmp.ge.s32.totalorder %s17, 4
      %s27 = sphi 0, %s29
      %s30 = sphi 0, %s27
      %s31 = sphi 0, %s30
      %s47 = sphi 0, %s31
      %s51 = sphi 0, %s51
      %s53 = sphi 0, %s51
      %s54 = sphi 0, %s53
      %s68 = sphi 0, %s54
      %s72 = sphi 0, %s72
      %s74 = sphi 0, %s72
      %s75 = sphi 0, %s74
      %s89 = sphi 0, %s75
      %s93 = sphi 0, %s93
      %s95 = sphi 0, %s93
      %s96 = sphi 0, %s95
      %s110 = sphi 0, %s96
      %s114 = sphi 0, %s114
      %s116 = sphi 0, %s114
      %s117 = sphi 0, %s116
      %s131 = sphi 0, %s117
      %s137 = sphi 0, %s139
      %s140 = sphi 0, %s137
      %s141 = sphi 0, %s140
      %s157 = sphi 0, %s141
    $region4: #{tpu_custom_call.1} parent=1 // loop_header_branch
      %20 = sbr.rel (%p18) target = $region8
    $region5: #{tpu_custom_call.1} parent=1 // loop_body
      %s22 = ssub.s32 %s17, 1
      %s23 = ssub.s32 %s17, 2
      %s24 = sadd.s32 %s17, 1
      %s25 = ssub.s32 %s17, %s24
      %p26 = scmp.eq.s32.totalorder %s25, 0
      %s28 = sadd.s32 %s27, 1
      %s29 = scalar_select %p26, %s27, %s28
      %p32 = pneg %p26
      %p33 = scmp.eq.s32.totalorder %s17, 1
      %p34 = por %p32, %p33
      %p35 = scmp.ne.s32.totalorder %s27, %s30
      %p36 = scmp.eq.s32.totalorder %s17, 0
      %p37 = por %p35, %p36
      %p38 = scmp.ne.s32.totalorder %s27, %s30
      %p39 = scmp.eq.s32.totalorder %s22, 1
      %p40 = por %p38, %p39
      %p41 = scmp.ne.s32.totalorder %s30, %s31
      %p42 = scmp.eq.s32.totalorder %s22, 0
      %p43 = por %p41, %p42
      %p44 = scmp.ne.s32.totalorder %s30, %s31
      %p45 = scmp.eq.s32.totalorder %s23, 1
      %p46 = por %p44, %p45
      %p48 = scmp.ne.s32.totalorder %s31, %s47
      %p49 = scmp.eq.s32.totalorder %s23, 0
      %p50 = por %p48, %p49
      %s52 = sadd.s32 %s51, 1
      %p55 = scmp.eq.s32.totalorder %s17, 1
      %p56 = scmp.ne.s32.totalorder %s51, %s53
      %p57 = scmp.eq.s32.totalorder %s17, 0
      %p58 = por %p56, %p57
      %p59 = scmp.ne.s32.totalorder %s51, %s53
      %p60 = scmp.eq.s32.totalorder %s22, 1
      %p61 = por %p59, %p60
      %p62 = scmp.ne.s32.totalorder %s53, %s54
      %p63 = scmp.eq.s32.totalorder %s22, 0
      %p64 = por %p62, %p63
      %p65 = scmp.ne.s32.totalorder %s53, %s54
      %p66 = scmp.eq.s32.totalorder %s23, 1
      %p67 = por %p65, %p66
      %p69 = scmp.ne.s32.totalorder %s54, %s68
      %p70 = scmp.eq.s32.totalorder %s23, 0
      %p71 = por %p69, %p70
      %s73 = sadd.s32 %s72, 1
      %p76 = scmp.eq.s32.totalorder %s17, 1
      %p77 = scmp.ne.s32.totalorder %s72, %s74
      %p78 = scmp.eq.s32.totalorder %s17, 0
      %p79 = por %p77, %p78
      %p80 = scmp.ne.s32.totalorder %s72, %s74
      %p81 = scmp.eq.s32.totalorder %s22, 1
      %p82 = por %p80, %p81
      %p83 = scmp.ne.s32.totalorder %s74, %s75
      %p84 = scmp.eq.s32.totalorder %s22, 0
      %p85 = por %p83, %p84
      %p86 = scmp.ne.s32.totalorder %s74, %s75
      %p87 = scmp.eq.s32.totalorder %s23, 1
      %p88 = por %p86, %p87
      %p90 = scmp.ne.s32.totalorder %s75, %s89
      %p91 = scmp.eq.s32.totalorder %s23, 0
      %p92 = por %p90, %p91
      %s94 = sadd.s32 %s93, 1
      %p97 = scmp.eq.s32.totalorder %s17, 1
      %p98 = scmp.ne.s32.totalorder %s93, %s95
      %p99 = scmp.eq.s32.totalorder %s17, 0
      %p100 = por %p98, %p99
      %p101 = scmp.ne.s32.totalorder %s93, %s95
      %p102 = scmp.eq.s32.totalorder %s22, 1
      %p103 = por %p101, %p102
      %p104 = scmp.ne.s32.totalorder %s95, %s96
      %p105 = scmp.eq.s32.totalorder %s22, 0
      %p106 = por %p104, %p105
      %p107 = scmp.ne.s32.totalorder %s95, %s96
      %p108 = scmp.eq.s32.totalorder %s23, 1
      %p109 = por %p107, %p108
      %p111 = scmp.ne.s32.totalorder %s96, %s110
      %p112 = scmp.eq.s32.totalorder %s23, 0
      %p113 = por %p111, %p112
      %s115 = sadd.s32 %s114, 1
      %p118 = scmp.eq.s32.totalorder %s17, 1
      %p119 = scmp.ne.s32.totalorder %s114, %s116
      %p120 = scmp.eq.s32.totalorder %s17, 0
      %p121 = por %p119, %p120
      %p122 = scmp.ne.s32.totalorder %s114, %s116
      %p123 = scmp.eq.s32.totalorder %s22, 1
      %p124 = por %p122, %p123
      %p125 = scmp.ne.s32.totalorder %s116, %s117
      %p126 = scmp.eq.s32.totalorder %s22, 0
      %p127 = por %p125, %p126
      %p128 = scmp.ne.s32.totalorder %s116, %s117
      %p129 = scmp.eq.s32.totalorder %s23, 1
      %p130 = por %p128, %p129
      %p132 = scmp.ne.s32.totalorder %s117, %s131
      %p133 = scmp.eq.s32.totalorder %s23, 0
      %p134 = por %p132, %p133
      %s135 = ssub.s32 %s17, %s24
      %p136 = scmp.eq.s32.totalorder %s135, 0
      %s138 = sadd.s32 %s137, 1
      %s139 = scalar_select %p136, %s137, %s138
      %p142 = pneg %p136
      %p143 = scmp.eq.s32.totalorder %s17, 1
      %p144 = por %p142, %p143
      %p145 = scmp.ne.s32.totalorder %s137, %s140
      %p146 = scmp.eq.s32.totalorder %s17, 0
      %p147 = por %p145, %p146
      %p148 = scmp.ne.s32.totalorder %s137, %s140
      %p149 = scmp.eq.s32.totalorder %s22, 1
      %p150 = por %p148, %p149
      %p151 = scmp.ne.s32.totalorder %s140, %s141
      %p152 = scmp.eq.s32.totalorder %s22, 0
      %p153 = por %p151, %p152
      %p154 = scmp.ne.s32.totalorder %s140, %s141
      %p155 = scmp.eq.s32.totalorder %s23, 1
      %p156 = por %p154, %p155
      %p158 = scmp.ne.s32.totalorder %s141, %s157
      %p159 = scmp.eq.s32.totalorder %s23, 0
      %p160 = por %p158, %p159
      %p161 = scmp.le.s32.totalorder 1, %s17
      %p162 = scmp.lt.s32.totalorder %s17, 3
      %p163 = pnand %p161, %p162
      %p164 = pneg %p163
      // Predicated region
      $region9: #{tpu_custom_call.1} parent=5 // pred_check
        _
      $region10: #{tpu_custom_call.1} parent=5 // pred_check_branch
        %166 = sbr.rel (%p163) target = $region12
      $region11: #{tpu_custom_call.1} parent=5 // pred_region
        %s167 = ssub.s32 %s17, 1
        // Predicated region
        $region13: #{tpu_custom_call.1} parent=11 // pred_check
          %p168 = pneg %p64
        $region14: #{tpu_custom_call.1} parent=11 // pred_check_branch
          %170 = sbr.rel (%p168) target = $region16
        $region15: #{tpu_custom_call.1} parent=11 // pred_region
          _
        $region16: #{tpu_custom_call.1} parent=11 // pred_fallthru
          _
        // Predicated region
        $region17: #{tpu_custom_call.1} parent=11 // pred_check
          %p171 = pneg %p85
        $region18: #{tpu_custom_call.1} parent=11 // pred_check_branch
          %173 = sbr.rel (%p171) target = $region20
        $region19: #{tpu_custom_call.1} parent=11 // pred_region
          _
        $region20: #{tpu_custom_call.1} parent=11 // pred_fallthru
          _
        // Predicated region
        $region21: #{tpu_custom_call.1} parent=11 // pred_check
          %p174 = pneg %p106
        $region22: #{tpu_custom_call.1} parent=11 // pred_check_branch
          %176 = sbr.rel (%p174) target = $region24
        $region23: #{tpu_custom_call.1} parent=11 // pred_region
          _
        $region24: #{tpu_custom_call.1} parent=11 // pred_fallthru
          _
        // Predicated region
        $region25: #{tpu_custom_call.1} parent=11 // pred_check
          %p177 = pneg %p127
        $region26: #{tpu_custom_call.1} parent=11 // pred_check_branch
          %179 = sbr.rel (%p177) target = $region28
        $region27: #{tpu_custom_call.1} parent=11 // pred_region
          _
        $region28: #{tpu_custom_call.1} parent=11 // pred_fallthru
          _
      $region12: #{tpu_custom_call.1} parent=5 // pred_fallthru
        _
      %p180 = scmp.lt.s32.totalorder %s17, 2
      // Predicated region
      $region29: #{tpu_custom_call.1} parent=5 // pred_check
        %p181 = pneg %p180
      $region30: #{tpu_custom_call.1} parent=5 // pred_check_branch
        %183 = sbr.rel (%p181) target = $region32
      $region31: #{tpu_custom_call.1} parent=5 // pred_region
        // Predicated region
        $region33: #{tpu_custom_call.1} parent=31 // pred_check
          %p184 = pneg %p37
        $region34: #{tpu_custom_call.1} parent=31 // pred_check_branch
          %186 = sbr.rel (%p184) target = $region36
        $region35: #{tpu_custom_call.1} parent=31 // pred_region
          %s187 = sand.u32 %s27, 1
          %s188 = scalar_lea.sflag [#allocation3], %s187
          %s189 = sand.u32 %s27, 1
          %s190 = smul.addr %s189, 8
          %s191 = scalar_lea.vmem [#allocation2], %s190
          %s193 = ssub.s32 128, 128
          %194 = vsyncadd %s188, %s193
          %s195 = smul.addr %s17, 128
          %s196 = scalar_lea.hbm %s0, %s195
          %s198 = sshll.u32 %s191, 4
          %s199 = int_to_ptr.vmem [resolvable:$true] %s198
          %201 = dma.hbm_to_vmem [thread:$0]  %s196, 128, %s199, %s188
        $region36: #{tpu_custom_call.1} parent=31 // pred_fallthru
          _
      $region32: #{tpu_custom_call.1} parent=5 // pred_fallthru
        _
      %p202 = scmp.le.s32.totalorder 1, %s17
      %p203 = scmp.lt.s32.totalorder %s17, 3
      %p204 = pnand %p202, %p203
      %p205 = pneg %p204
      // Predicated region
      $region37: #{tpu_custom_call.1} parent=5 // pred_check
        _
      $region38: #{tpu_custom_call.1} parent=5 // pred_check_branch
        %207 = sbr.rel (%p204) target = $region40
      $region39: #{tpu_custom_call.1} parent=5 // pred_region
        %s208 = ssub.s32 %s17, 1
        %s209 = sand.u32 %s30, 1
        %s210 = scalar_lea.sflag [#allocation3], %s209
        %s211 = sand.u32 %s30, 1
        %s212 = smul.addr %s211, 8
        %s213 = scalar_lea.vmem [#allocation2], %s212
        // Predicated region
        $region41: #{tpu_custom_call.1} parent=39 // pred_check
          %p214 = pneg %p43
        $region42: #{tpu_custom_call.1} parent=39 // pred_check_branch
          %216 = sbr.rel (%p214) target = $region44
        $region43: #{tpu_custom_call.1} parent=39 // pred_region
          %217 = dma.done %s210, 128
        $region44: #{tpu_custom_call.1} parent=39 // pred_fallthru
          _
        %s218 = sand.u32 %s30, 1
        %s219 = scalar_lea.sflag [#allocation3], %s218
        %s220 = sand.u32 %s30, 1
        %s221 = smul.addr %s220, 8
        %s222 = scalar_lea.vmem [#allocation2], %s221
        %p223 = pneg %p43
        %p224 = pneg %p40
        %p225 = pneg %p64
        %p226 = pneg %p61
        %p227 = pneg %p85
        %p228 = pneg %p82
        %p229 = pneg %p106
        %p230 = pneg %p103
        %p231 = pneg %p127
        %p232 = pneg %p124
        %p233 = pneg %p153
        %p234 = pneg %p150
        %s235 = sand.u32 %s140, 1
        %s236 = scalar_lea.sflag [#allocation4], %s235
        %s237 = sand.u32 %s140, 1
        %s238 = smul.addr %s237, 8
        %s239 = scalar_lea.vmem [#allocation5], %s238
        %v240 = vld [vmem:[%s1] sm:$0x1]
        %v242 = vlaneseq
        %v243 = vshrl.u32 %v242, 7
        %v244 = vsub.s32 0, %v243
        %v245 = vrot.slane %v240, %v244
        %v246 = vld [vmem:[%s2] sm:$0x1]
        %v248 = vlaneseq
        %v249 = vshrl.u32 %v248, 7
        %v250 = vsub.s32 0, %v249
        %v251 = vrot.slane %v246, %v250
        %v252 = vld [vmem:[%s4] sm:$0xff]
        %254 = vset.pattern.permute.xlu0 0
        %255 = vperm.xlu0 %254, %v252
        %v256 = vpop.permute.xlu0 %255
        %v258 = vld [vmem:[%s3] sm:$0xff]
        %v259 = vld [vmem:[%s213] sm:$0xff]
        %261 = vrot.lane.b32.xlu0 %v259, 112
        %v262 = vpop.permute.xlu0 %261
        %vm264 = vcmask 130048
        %v265 = vsel %vm264, %v262, 0.0
        %266 = vadd.xlane.f32.xlu0 %v265
        %v267 = vpop.xlane.xlu0 %266
        %v268 = vrcp.pop 16.0
        %v269 = vmul.f32 %v267, %v268
        %v270 = vsub.f32 %v259, %v269
        %v271 = vmul.f32 %v270, %v270
        %273 = vrot.lane.b32.xlu0 %v271, 112
        %v274 = vpop.permute.xlu0 %273
        %v276 = vsel %vm264, %v274, 0.0
        %277 = vadd.xlane.f32.xlu0 %v276
        %v278 = vpop.xlane.xlu0 %277
        %v279 = vmul.f32 %v278, %v268
        %v280 = vadd.f32 %v279, 1e-05
        %v281 = vrsqrt.pop %v280
        %v282 = vmul.f32 %v270, %v281
        %283 = vrot.lane.b32.xlu0 %v245, 16
        %v284 = vpop.permute.xlu0 %283
        %v286 = vmul.f32 %v282, %v284
        %287 = vrot.lane.b32.xlu0 %v251, 16
        %v288 = vpop.permute.xlu0 %287
        %v290 = vadd.f32 %v286, %v288
        %292 = vrot.lane.b32.xlu0 %v290, 112
        %v293 = vpop.permute.xlu0 %292
        %vm295 = vcmask 64512
        %v297 = vsel %vm295, %v258, 0
        %299 = vmatprep.subr.mxu0 0.0
        %300 = vmatpush1.msra.mxu0 %v293
        %301 = vmatprep.subr.mxu0 0.0
        %302 = vmatpush1.msra.mxu0 0.0
        %303 = vmatprep.subr.mxu0 0.0
        %304 = vmatpush1.msra.mxu0 0.0
        %305 = vmatprep.subr.mxu0 0.0
        %306 = vmatpush1.msra.mxu0 0.0
        %307 = vmatprep.subr.mxu0 0.0
        %308 = vmatpush1.msra.mxu0 0.0
        %309 = vmatprep.subr.mxu0 0.0
        %310 = vmatpush1.msra.mxu0 0.0
        %311 = vmatprep.subr.mxu0 0.0
        %312 = vmatpush1.msra.mxu0 0.0
        %313 = vmatprep.subr.mxu0 0.0
        %314 = vmatpush1.msra.mxu0 0.0
        %315 = vmatprep.subr.mxu0 0.0
        %316 = vmatpush1.msra.mxu0 0.0
        %317 = vmatprep.subr.mxu0 0.0
        %318 = vmatpush1.msra.mxu0 0.0
        %319 = vmatprep.subr.mxu0 0.0
        %320 = vmatpush1.msra.mxu0 0.0
        %321 = vmatprep.subr.mxu0 0.0
        %322 = vmatpush1.msra.mxu0 0.0
        %323 = vmatprep.subr.mxu0 0.0
        %324 = vmatpush1.msra.mxu0 0.0
        %325 = vmatprep.subr.mxu0 0.0
        %326 = vmatpush1.msra.mxu0 0.0
        %327 = vmatprep.subr.mxu0 0.0
        %328 = vmatpush1.msra.mxu0 0.0
        %329 = vmatprep.subr.mxu0 0.0
        %330 = vmatpush1.msra.mxu0 0.0
        %331 = vmatprep.subr.mxu0 0.0
        %332 = vmatpush1.msra.mxu0 0.0
        %333 = vmatprep.subr.mxu0 0.0
        %334 = vmatpush1.msra.mxu0 0.0
        %335 = vmatprep.subr.mxu0 0.0
        %336 = vmatpush1.msra.mxu0 0.0
        %337 = vmatprep.subr.mxu0 0.0
        %338 = vmatpush1.msra.mxu0 0.0
        %339 = vmatprep.subr.mxu0 0.0
        %340 = vmatpush1.msra.mxu0 0.0
        %341 = vmatprep.subr.mxu0 0.0
        %342 = vmatpush1.msra.mxu0 0.0
        %343 = vmatprep.subr.mxu0 0.0
        %344 = vmatpush1.msra.mxu0 0.0
        %345 = vmatprep.subr.mxu0 0.0
        %346 = vmatpush1.msra.mxu0 0.0
        %347 = vmatprep.subr.mxu0 0.0
        %348 = vmatpush1.msra.mxu0 0.0
        %349 = vmatprep.subr.mxu0 0.0
        %350 = vmatpush1.msra.mxu0 0.0
        %351 = vmatprep.subr.mxu0 0.0
        %352 = vmatpush1.msra.mxu0 0.0
        %353 = vmatprep.subr.mxu0 0.0
        %354 = vmatpush1.msra.mxu0 0.0
        %355 = vmatprep.subr.mxu0 0.0
        %356 = vmatpush1.msra.mxu0 0.0
        %357 = vmatprep.subr.mxu0 0.0
        %358 = vmatpush1.msra.mxu0 0.0
        %359 = vmatprep.subr.mxu0 0.0
        %360 = vmatpush1.msra.mxu0 0.0
        %361 = vmatprep.subr.mxu0 0.0
        %362 = vmatpush1.msra.mxu0 0.0
        %363 = vmatprep.mubr.f32.mxu0 0.0
        %364 = vmatmul.mubr.f32.gmra.mrb[0].mxu0 %v297
        %v365 = vpop.f32.mrb[0].mxu0
        %v366 = vadd.f32 %v256, %v365
        %v367 = vpop.f32.mrb[0].mxu0
        %368 = vdwg.mxu0
        %v369 = vmul.f32 %v259, %v366
        %370 = vst.msk [vmem:[%s239] sm:$0xff] %vm264, %v369
        %s371 = sand.u32 %s140, 1
        %s372 = scalar_lea.sflag [#allocation4], %s371
        %s373 = sand.u32 %s140, 1
        %s374 = smul.addr %s373, 8
        %s375 = scalar_lea.vmem [#allocation5], %s374
        // Predicated region
        $region45: #{tpu_custom_call.1} parent=39 // pred_check
          %p376 = pneg %p150
        $region46: #{tpu_custom_call.1} parent=39 // pred_check_branch
          %378 = sbr.rel (%p376) target = $region48
        $region47: #{tpu_custom_call.1} parent=39 // pred_region
          %s380 = ssub.s32 128, 128
          %381 = vsyncadd %s372, %s380
          %s382 = smul.addr %s22, 128
          %s383 = scalar_lea.hbm %s5, %s382
          %s385 = sshll.u32 %s375, 4
          %s386 = int_to_ptr.vmem [resolvable:$true] %s385
          %388 = dma.vmem_to_hbm [thread:$0]  %s386, 128, %s383, %s372
        $region48: #{tpu_custom_call.1} parent=39 // pred_fallthru
          _
      $region40: #{tpu_custom_call.1} parent=5 // pred_fallthru
        _
      %p389 = scmp.le.s32.totalorder 2, %s17
      // Predicated region
      $region49: #{tpu_custom_call.1} parent=5 // pred_check
        %p390 = pneg %p389
      $region50: #{tpu_custom_call.1} parent=5 // pred_check_branch
        %392 = sbr.rel (%p390) target = $region52
      $region51: #{tpu_custom_call.1} parent=5 // pred_region
        %s393 = ssub.s32 %s17, 2
        // Predicated region
        $region53: #{tpu_custom_call.1} parent=51 // pred_check
          %p394 = pneg %p156
        $region54: #{tpu_custom_call.1} parent=51 // pred_check_branch
          %396 = sbr.rel (%p394) target = $region56
        $region55: #{tpu_custom_call.1} parent=51 // pred_region
          %s397 = sand.u32 %s141, 1
          %s398 = scalar_lea.sflag [#allocation4], %s397
          %s399 = sand.u32 %s141, 1
          %s400 = smul.addr %s399, 8
          %s401 = scalar_lea.vmem [#allocation5], %s400
          %402 = dma.done %s398, 128
        $region56: #{tpu_custom_call.1} parent=51 // pred_fallthru
          _
      $region52: #{tpu_custom_call.1} parent=5 // pred_fallthru
        _
    $region6: #{tpu_custom_call.1} parent=1 // loop_footer
      %s21 = sadd.s32 1, %s17
    $region7: #{tpu_custom_call.1} parent=1 // loop_footer_branch
      %16 = sbr.rel target = $region3
    $region8: #{tpu_custom_call.1} parent=1 // loop_exit
      _
    %403 = vsyncpa [#allocation3], 1
    %s404 = scalar_lea.sflag [#allocation3], 1
    %405 = vsyncpa %s404, 1
    %406 = vsyncpa [#allocation4], 1
    %s407 = scalar_lea.sflag [#allocation4], 1
    %408 = vsyncpa %s407, 1

</llo_original>
